<compile_context>
chip_gen: v7x
topology: tpu7x:2x2x1
jax: 0.10.0
libtpu: 0.0.40
codegen_flags: <defaults>
</compile_context>

<pallas_src>
import jax
import jax.numpy as jnp
from jax.experimental import pallas as pl
from jax.experimental.pallas import tpu as pltpu


def _gate_kernel(w1_ref, u_ref, b_ref, x_ref, h_ref, o_ref):
    # Explicit precision decision: bf16 MXU operands, f32 accumulation.
    w1 = w1_ref[...].astype(jnp.bfloat16)
    u = u_ref[...].astype(jnp.bfloat16)
    x = x_ref[...].astype(jnp.bfloat16)
    h = h_ref[...].astype(jnp.bfloat16)

    # Two MXU contractions with f32 accumulation (W1 @ x + U @ hidden).
    acc = jnp.dot(w1, x, preferred_element_type=jnp.float32)
    acc = acc + jnp.dot(u, h, preferred_element_type=jnp.float32)

    # f32 bias add (VPU) + sigmoid (EUP) epilogue; f32 store (v5e-safe).
    o_ref[...] = jax.nn.sigmoid(acc + b_ref[...]).astype(o_ref.dtype)


@jax.jit
def mat_gru_gate_1(w1, u, bias, x, hidden):
    """Pallas implementation of mat_GRU_gate_1.forward (sigmoid activation)."""
    rows, cols = bias.shape
    assert w1.shape == (rows, rows) and u.shape == (rows, rows)
    assert x.shape == (rows, cols) and hidden.shape == (rows, cols)

    out_dtype = x.dtype
    itemsize = jnp.dtype(out_dtype).itemsize

    cost = pl.CostEstimate(
        flops=2 * (2 * rows * rows * cols),       # two (rows x rows x cols) matmuls
        transcendentals=rows * cols,              # sigmoid exp
        bytes_accessed=(2 * rows * rows * 4       # W1, U (f32)
                        + 3 * rows * cols * 4     # bias, x, hidden (f32)
                        + rows * cols * itemsize  # output
                        ),
    )

    return pl.pallas_call(
        _gate_kernel,
        out_shape=jax.ShapeDtypeStruct((rows, cols), out_dtype),
        grid=(),
        in_specs=[
            pl.BlockSpec((rows, rows), lambda: (0, 0)),   # W1  (full array)
            pl.BlockSpec((rows, rows), lambda: (0, 0)),   # U   (full array)
            pl.BlockSpec((rows, cols), lambda: (0, 0)),   # bias
            pl.BlockSpec((rows, cols), lambda: (0, 0)),   # x
            pl.BlockSpec((rows, cols), lambda: (0, 0)),   # hidden
        ],
        out_specs=pl.BlockSpec((rows, cols), lambda: (0, 0)),
        cost_estimate=cost,
    )(w1, u, bias, x, hidden)


if __name__ == "__main__":
    # Module docstring shapes: rows=162, cols=100.
    rows, cols = 162, 100
    key = jax.random.PRNGKey(0)
    k_w1, k_u, k_b, k_x, k_h = jax.random.split(key, 5)

    # Deterministic synthetic parameters (PyTorch init is zeros; use small
    # random values so the kernel exercises non-trivial compute).
    w1 = jax.random.normal(k_w1, (rows, rows), dtype=jnp.float32) * 0.05
    u = jax.random.normal(k_u, (rows, rows), dtype=jnp.float32) * 0.05
    bias = jax.random.normal(k_b, (rows, cols), dtype=jnp.float32) * 0.05

    x = jax.random.normal(k_x, (rows, cols), dtype=jnp.float32)
    hidden = jax.random.normal(k_h, (rows, cols), dtype=jnp.float32)

    out = mat_gru_gate_1(w1, u, bias, x, hidden)
    out = jax.block_until_ready(out)
    assert out.shape == (rows, cols)
    assert out.dtype == jnp.float32

    # Reference 1: same bf16-input / f32-accumulate precision as the kernel.
    w1_bf, u_bf = w1.astype(jnp.bfloat16), u.astype(jnp.bfloat16)
    x_bf, h_bf = x.astype(jnp.bfloat16), hidden.astype(jnp.bfloat16)
    ref_bf16 = jax.nn.sigmoid(
        jnp.dot(w1_bf, x_bf, preferred_element_type=jnp.float32)
        + jnp.dot(u_bf, h_bf, preferred_element_type=jnp.float32)
        + bias
    )
    assert jnp.allclose(out, ref_bf16, atol=1e-4, rtol=1e-4), (
        float(jnp.max(jnp.abs(out - ref_bf16)))
    )

    # Reference 2: full-f32 forward (loose tolerance covers the bf16 cast).
    ref_f32 = jax.nn.sigmoid(w1 @ x + u @ hidden + bias)
    assert jnp.allclose(out, ref_f32, atol=3e-2, rtol=3e-2), (
        float(jnp.max(jnp.abs(out - ref_f32)))
    )

    print("KERNEL_OK")
</pallas_src>

<mosaic_0001>
module attributes {stable_mosaic.version = 11 : i64} {
  func.func @_gate_kernel(%arg0: memref<162x162xf32, #tpu.memory_space<vmem>>, %arg1: memref<162x162xf32, #tpu.memory_space<vmem>>, %arg2: memref<162x100xf32, #tpu.memory_space<vmem>>, %arg3: memref<162x100xf32, #tpu.memory_space<vmem>>, %arg4: memref<162x100xf32, #tpu.memory_space<vmem>>, %arg5: memref<162x100xf32, #tpu.memory_space<vmem>>) attributes {dimension_semantics = [], scalar_prefetch = 0 : i64, scratch_operands = 0 : i64, tpu.core_type = #tpu.core_type<tc>} {
    %c0 = arith.constant 0 : index
    %c0_0 = arith.constant 0 : index
    %0 = vector.load %arg0[%c0, %c0_0] : memref<162x162xf32, #tpu.memory_space<vmem>>, vector<162x162xf32>
    %1 = arith.truncf %0 : vector<162x162xf32> to vector<162x162xbf16>
    %c0_1 = arith.constant 0 : index
    %c0_2 = arith.constant 0 : index
    %2 = vector.load %arg1[%c0_1, %c0_2] : memref<162x162xf32, #tpu.memory_space<vmem>>, vector<162x162xf32>
    %3 = arith.truncf %2 : vector<162x162xf32> to vector<162x162xbf16>
    %c0_3 = arith.constant 0 : index
    %c0_4 = arith.constant 0 : index
    %4 = vector.load %arg3[%c0_3, %c0_4] : memref<162x100xf32, #tpu.memory_space<vmem>>, vector<162x100xf32>
    %5 = arith.truncf %4 : vector<162x100xf32> to vector<162x100xbf16>
    %c0_5 = arith.constant 0 : index
    %c0_6 = arith.constant 0 : index
    %6 = vector.load %arg4[%c0_5, %c0_6] : memref<162x100xf32, #tpu.memory_space<vmem>>, vector<162x100xf32>
    %7 = arith.truncf %6 : vector<162x100xf32> to vector<162x100xbf16>
    %cst = arith.constant dense<0.000000e+00> : vector<162x100xf32>
    %8 = tpu.matmul %1, %5, %cst {dimension_numbers = #tpu.dot_dimension_numbers<[1], [0], [0], [1], [0, 0, 1, 1], [], []>} : vector<162x162xbf16>, vector<162x100xbf16>, vector<162x100xf32> -> vector<162x100xf32>
    %cst_7 = arith.constant dense<0.000000e+00> : vector<162x100xf32>
    %9 = tpu.matmul %3, %7, %cst_7 {dimension_numbers = #tpu.dot_dimension_numbers<[1], [0], [0], [1], [0, 0, 1, 1], [], []>} : vector<162x162xbf16>, vector<162x100xbf16>, vector<162x100xf32> -> vector<162x100xf32>
    %10 = arith.addf %8, %9 : vector<162x100xf32>
    %c0_8 = arith.constant 0 : index
    %c0_9 = arith.constant 0 : index
    %11 = vector.load %arg2[%c0_8, %c0_9] : memref<162x100xf32, #tpu.memory_space<vmem>>, vector<162x100xf32>
    %12 = arith.addf %10, %11 : vector<162x100xf32>
    %13 = arith.negf %12 : vector<162x100xf32>
    %14 = math.exp %13 : vector<162x100xf32>
    %cst_10 = arith.constant 1.000000e+00 : f32
    %15 = vector.broadcast %cst_10 : f32 to vector<162x100xf32>
    %16 = arith.addf %15, %14 : vector<162x100xf32>
    %17 = arith.divf %15, %16 : vector<162x100xf32>
    %c0_11 = arith.constant 0 : index
    %c0_12 = arith.constant 0 : index
    %18 = vector.load %arg5[%c0_11, %c0_12] : memref<162x100xf32, #tpu.memory_space<vmem>>, vector<162x100xf32>
    tpu.vector_store %arg5[%c0_11, %c0_12], %17 {strides = array<i32>} : memref<162x100xf32, #tpu.memory_space<vmem>>, vector<162x100xf32>,
    return
  }
}

</mosaic_0001>

<llo_original>
// kernel: mat_gru_gate_1.1
$region0: #{mat_gru_gate_1.1}
  #allocation0 [shape = 'u32[]', space=smem, size = 0x4, offset = 0x4, fixed_abs, tag = 'smem constant byte address 0x4 - core index']
  #allocation1 [shape = 'u32[144,128]{1,0:T(1,128)}', space=vmem, size = 0x12000, scoped, tag = 'internal scratch']
  %s0 = inlined_call_operand.hbm [shape: f32[162,162], index: 0, kind: input, shape index: {}]
  %s1 = inlined_call_operand.hbm [shape: f32[162,162], index: 1, kind: input, shape index: {}]
  %s2 = inlined_call_operand.hbm [shape: f32[162,100], index: 2, kind: input, shape index: {}]
  %s3 = inlined_call_operand.hbm [shape: f32[162,100], index: 3, kind: input, shape index: {}]
  %s4 = inlined_call_operand.hbm [shape: f32[162,100], index: 4, kind: input, shape index: {}]
  %s5 = inlined_call_operand.hbm [shape: f32[162,100], index: 5, kind: output, shape index: {}]
  %s6 = sld [smem:[#allocation0]]
  $region50: #{mat_gru_gate_1.1} parent=0
    _
  %s8 = ssub.s32 1, %s6
  %s9 = scalar_select 0, %s8, %s6
  $region1: #{mat_gru_gate_1.1} parent=0
    #allocation2 [shape = 'u8[172032]{0}', space=vmem, size = 0x2a000, scoped, tag = 'input window, operand 0, single buffered']
    #allocation3 [shape = 's32[1]{0}', space=sflag, size = 0x4, scoped, tag = 'scoped memory for mat_gru_gate_1.1']
    #allocation4 [shape = 's32[1]{0}', space=sflag, size = 0x4, scoped, tag = 'scoped memory for mat_gru_gate_1.1']
    #allocation5 [shape = 'u8[172032]{0}', space=vmem, size = 0x2a000, scoped, tag = 'input window, operand 1, single buffered']
    #allocation6 [shape = 's32[1]{0}', space=sflag, size = 0x4, scoped, tag = 'scoped memory for mat_gru_gate_1.1']
    #allocation7 [shape = 'u8[86016]{0}', space=vmem, size = 0x15000, scoped, tag = 'input window, operand 2, single buffered']
    #allocation8 [shape = 'u8[86016]{0}', space=vmem, size = 0x15000, scoped, tag = 'input window, operand 3, single buffered']
    #allocation9 [shape = 's32[1]{0}', space=sflag, size = 0x4, scoped, tag = 'scoped memory for mat_gru_gate_1.1']
    #allocation10 [shape = 'u8[86016]{0}', space=vmem, size = 0x15000, scoped, tag = 'input window, operand 4, single buffered']
    #allocation11 [shape = 'u8[86016]{0}', space=vmem, size = 0x15000, scoped, tag = 'output window, operand 0, single buffered']
    %10 = vsyncpa [#allocation3], 0
    %11 = vsyncpa [#allocation6], 0
    %12 = vsyncpa [#allocation9], 0
    %13 = vsyncpa [#allocation4], 0
    // Predicated region
    $region2: #{mat_gru_gate_1.1} parent=1 // pred_check
      _
    $region3: #{mat_gru_gate_1.1} parent=1 // pred_check_branch
      %15 = sbr.rel (0) target = $region5
    $region4: #{mat_gru_gate_1.1} parent=1 // pred_region
      %s17 = ssub.s32 5376, 5376
      %18 = vsyncadd [#allocation3], %s17
      %s19 = sshll.u32 [#allocation2], 4
      %s20 = int_to_ptr.vmem [resolvable:$true] %s19
      %25 = dma.hbm_to_vmem [thread:$0]  %s0, 5376, %s20, [#allocation3], 256, 256, 16
    $region5: #{mat_gru_gate_1.1} parent=1 // pred_fallthru
      _
    // Predicated region
    $region6: #{mat_gru_gate_1.1} parent=1 // pred_check
      _
    $region7: #{mat_gru_gate_1.1} parent=1 // pred_check_branch
      %27 = sbr.rel (0) target = $region9
    $region8: #{mat_gru_gate_1.1} parent=1 // pred_region
      %s29 = ssub.s32 5376, 5376
      %30 = vsyncadd [#allocation6], %s29
      %s31 = sshll.u32 [#allocation5], 4
      %s32 = int_to_ptr.vmem [resolvable:$true] %s31
      %37 = dma.hbm_to_vmem [thread:$0]  %s1, 5376, %s32, [#allocation6], 256, 256, 16
    $region9: #{mat_gru_gate_1.1} parent=1 // pred_fallthru
      _
    // Predicated region
    $region10: #{mat_gru_gate_1.1} parent=1 // pred_check
      _
    $region11: #{mat_gru_gate_1.1} parent=1 // pred_check_branch
      %39 = sbr.rel (0) target = $region13
    $region12: #{mat_gru_gate_1.1} parent=1 // pred_region
      %s41 = ssub.s32 2688, 2688
      %42 = vsyncadd [#allocation6], %s41
      %s43 = sshll.u32 [#allocation7], 4
      %s44 = int_to_ptr.vmem [resolvable:$true] %s43
      %49 = dma.hbm_to_vmem [thread:$0]  %s2, 2688, %s44, [#allocation6], 128, 128, 8
    $region13: #{mat_gru_gate_1.1} parent=1 // pred_fallthru
      _
    // Predicated region
    $region14: #{mat_gru_gate_1.1} parent=1 // pred_check
      _
    $region15: #{mat_gru_gate_1.1} parent=1 // pred_check_branch
      %51 = sbr.rel (0) target = $region17
    $region16: #{mat_gru_gate_1.1} parent=1 // pred_region
      %s53 = ssub.s32 2688, 2688
      %54 = vsyncadd [#allocation9], %s53
      %s55 = sshll.u32 [#allocation8], 4
      %s56 = int_to_ptr.vmem [resolvable:$true] %s55
      %61 = dma.hbm_to_vmem [thread:$0]  %s3, 2688, %s56, [#allocation9], 128, 128, 8
    $region17: #{mat_gru_gate_1.1} parent=1 // pred_fallthru
      _
    // Predicated region
    $region18: #{mat_gru_gate_1.1} parent=1 // pred_check
      _
    $region19: #{mat_gru_gate_1.1} parent=1 // pred_check_branch
      %63 = sbr.rel (0) target = $region21
    $region20: #{mat_gru_gate_1.1} parent=1 // pred_region
      %s65 = ssub.s32 2688, 2688
      %66 = vsyncadd [#allocation9], %s65
      %s67 = sshll.u32 [#allocation10], 4
      %s68 = int_to_ptr.vmem [resolvable:$true] %s67
      %73 = dma.hbm_to_vmem [thread:$0]  %s4, 2688, %s68, [#allocation9], 128, 128, 8
    $region21: #{mat_gru_gate_1.1} parent=1 // pred_fallthru
      _
    // Predicated region
    $region22: #{mat_gru_gate_1.1} parent=1 // pred_check
      _
    $region23: #{mat_gru_gate_1.1} parent=1 // pred_check_branch
      %75 = sbr.rel (0) target = $region25
    $region24: #{mat_gru_gate_1.1} parent=1 // pred_region
      %76 = dma.done [#allocation3], 5376
    $region25: #{mat_gru_gate_1.1} parent=1 // pred_fallthru
      _
    // Predicated region
    $region26: #{mat_gru_gate_1.1} parent=1 // pred_check
      _
    $region27: #{mat_gru_gate_1.1} parent=1 // pred_check_branch
      %78 = sbr.rel (0) target = $region29
    $region28: #{mat_gru_gate_1.1} parent=1 // pred_region
      %79 = dma.done [#allocation6], 5376
    $region29: #{mat_gru_gate_1.1} parent=1 // pred_fallthru
      _
    // Predicated region
    $region30: #{mat_gru_gate_1.1} parent=1 // pred_check
      _
    $region31: #{mat_gru_gate_1.1} parent=1 // pred_check_branch
      %81 = sbr.rel (0) target = $region33
    $region32: #{mat_gru_gate_1.1} parent=1 // pred_region
      %82 = dma.done [#allocation6], 2688
    $region33: #{mat_gru_gate_1.1} parent=1 // pred_fallthru
      _
    // Predicated region
    $region34: #{mat_gru_gate_1.1} parent=1 // pred_check
      _
    $region35: #{mat_gru_gate_1.1} parent=1 // pred_check_branch
      %84 = sbr.rel (0) target = $region37
    $region36: #{mat_gru_gate_1.1} parent=1 // pred_region
      %85 = dma.done [#allocation9], 2688
    $region37: #{mat_gru_gate_1.1} parent=1 // pred_fallthru
      _
    // Predicated region
    $region38: #{mat_gru_gate_1.1} parent=1 // pred_check
      _
    $region39: #{mat_gru_gate_1.1} parent=1 // pred_check_branch
      %87 = sbr.rel (0) target = $region41
    $region40: #{mat_gru_gate_1.1} parent=1 // pred_region
      %88 = dma.done [#allocation9], 2688
    $region41: #{mat_gru_gate_1.1} parent=1 // pred_fallthru
      _
    %v90 = vld [vmem:[#allocation2] sm:$0xff]
    %v91 = vld [vmem:[#allocation2 + $0x8] sm:$0xff]
    %v92 = vld [vmem:[#allocation2 + $0x10] sm:$0xff]
    %v93 = vld [vmem:[#allocation2 + $0x18] sm:$0xff]
    %v94 = vld [vmem:[#allocation2 + $0x20] sm:$0xff]
    %v95 = vld [vmem:[#allocation2 + $0x28] sm:$0xff]
    %v96 = vld [vmem:[#allocation2 + $0x30] sm:$0xff]
    %v97 = vld [vmem:[#allocation2 + $0x38] sm:$0xff]
    %v98 = vld [vmem:[#allocation2 + $0x40] sm:$0xff]
    %v99 = vld [vmem:[#allocation2 + $0x48] sm:$0xff]
    %v100 = vld [vmem:[#allocation2 + $0x50] sm:$0xff]
    %v101 = vld [vmem:[#allocation2 + $0x58] sm:$0xff]
    %v102 = vld [vmem:[#allocation2 + $0x60] sm:$0xff]
    %v103 = vld [vmem:[#allocation2 + $0x68] sm:$0xff]
    %v104 = vld [vmem:[#allocation2 + $0x70] sm:$0xff]
    %v105 = vld [vmem:[#allocation2 + $0x78] sm:$0xff]
    %v106 = vld [vmem:[#allocation2 + $0x80] sm:$0xff]
    %v107 = vld [vmem:[#allocation2 + $0x88] sm:$0xff]
    %v108 = vld [vmem:[#allocation2 + $0x90] sm:$0xff]
    %v109 = vld [vmem:[#allocation2 + $0x98] sm:$0xff]
    %v110 = vld [vmem:[#allocation2 + $0xa0] sm:$0xff]
    %v111 = vld [vmem:[#allocation2 + $0xa8] sm:$0xff]
    %v112 = vld [vmem:[#allocation2 + $0xb0] sm:$0xff]
    %v113 = vld [vmem:[#allocation2 + $0xb8] sm:$0xff]
    %v114 = vld [vmem:[#allocation2 + $0xc0] sm:$0xff]
    %v115 = vld [vmem:[#allocation2 + $0xc8] sm:$0xff]
    %v116 = vld [vmem:[#allocation2 + $0xd0] sm:$0xff]
    %v117 = vld [vmem:[#allocation2 + $0xd8] sm:$0xff]
    %v118 = vld [vmem:[#allocation2 + $0xe0] sm:$0xff]
    %v119 = vld [vmem:[#allocation2 + $0xe8] sm:$0xff]
    %v120 = vld [vmem:[#allocation2 + $0xf0] sm:$0xff]
    %v121 = vld [vmem:[#allocation2 + $0xf8] sm:$0xff]
    %v122 = vld [vmem:[#allocation2 + $0x100] sm:$0xff]
    %v123 = vld [vmem:[#allocation2 + $0x108] sm:$0xff]
    %v124 = vld [vmem:[#allocation2 + $0x110] sm:$0xff]
    %v125 = vld [vmem:[#allocation2 + $0x118] sm:$0xff]
    %v126 = vld [vmem:[#allocation2 + $0x120] sm:$0xff]
    %v127 = vld [vmem:[#allocation2 + $0x128] sm:$0xff]
    %v128 = vld [vmem:[#allocation2 + $0x130] sm:$0xff]
    %v129 = vld [vmem:[#allocation2 + $0x138] sm:$0xff]
    %v130 = vld [vmem:[#allocation2 + $0x140] sm:$0x3]
    %v131 = vld [vmem:[#allocation2 + $0x148] sm:$0x3]
    %v132 = vpack.c.bf16 %v92, %v90
    %v133 = vpack.c.bf16 %v93, %v91
    %v134 = vpack.c.bf16 %v96, %v94
    %v135 = vpack.c.bf16 %v97, %v95
    %v136 = vpack.c.bf16 %v100, %v98
    %v137 = vpack.c.bf16 %v101, %v99
    %v138 = vpack.c.bf16 %v104, %v102
    %v139 = vpack.c.bf16 %v105, %v103
    %v140 = vpack.c.bf16 %v108, %v106
    %v141 = vpack.c.bf16 %v109, %v107
    %v142 = vpack.c.bf16 %v112, %v110
    %v143 = vpack.c.bf16 %v113, %v111
    %v144 = vpack.c.bf16 %v116, %v114
    %v145 = vpack.c.bf16 %v117, %v115
    %v146 = vpack.c.bf16 %v120, %v118
    %v147 = vpack.c.bf16 %v121, %v119
    %v148 = vpack.c.bf16 %v124, %v122
    %v149 = vpack.c.bf16 %v125, %v123
    %v150 = vpack.c.bf16 %v128, %v126
    %v151 = vpack.c.bf16 %v129, %v127
    %v152 = vpack.c.bf16 %v130, %v130
    %v153 = vpack.c.bf16 %v131, %v131
    %v154 = vld [vmem:[#allocation5] sm:$0xff]
    %v155 = vld [vmem:[#allocation5 + $0x8] sm:$0xff]
    %v156 = vld [vmem:[#allocation5 + $0x10] sm:$0xff]
    %v157 = vld [vmem:[#allocation5 + $0x18] sm:$0xff]
    %v158 = vld [vmem:[#allocation5 + $0x20] sm:$0xff]
    %v159 = vld [vmem:[#allocation5 + $0x28] sm:$0xff]
    %v160 = vld [vmem:[#allocation5 + $0x30] sm:$0xff]
    %v161 = vld [vmem:[#allocation5 + $0x38] sm:$0xff]
    %v162 = vld [vmem:[#allocation5 + $0x40] sm:$0xff]
    %v163 = vld [vmem:[#allocation5 + $0x48] sm:$0xff]
    %v164 = vld [vmem:[#allocation5 + $0x50] sm:$0xff]
    %v165 = vld [vmem:[#allocation5 + $0x58] sm:$0xff]
    %v166 = vld [vmem:[#allocation5 + $0x60] sm:$0xff]
    %v167 = vld [vmem:[#allocation5 + $0x68] sm:$0xff]
    %v168 = vld [vmem:[#allocation5 + $0x70] sm:$0xff]
    %v169 = vld [vmem:[#allocation5 + $0x78] sm:$0xff]
    %v170 = vld [vmem:[#allocation5 + $0x80] sm:$0xff]
    %v171 = vld [vmem:[#allocation5 + $0x88] sm:$0xff]
    %v172 = vld [vmem:[#allocation5 + $0x90] sm:$0xff]
    %v173 = vld [vmem:[#allocation5 + $0x98] sm:$0xff]
    %v174 = vld [vmem:[#allocation5 + $0xa0] sm:$0xff]
    %v175 = vld [vmem:[#allocation5 + $0xa8] sm:$0xff]
    %v176 = vld [vmem:[#allocation5 + $0xb0] sm:$0xff]
    %v177 = vld [vmem:[#allocation5 + $0xb8] sm:$0xff]
    %v178 = vld [vmem:[#allocation5 + $0xc0] sm:$0xff]
    %v179 = vld [vmem:[#allocation5 + $0xc8] sm:$0xff]
    %v180 = vld [vmem:[#allocation5 + $0xd0] sm:$0xff]
    %v181 = vld [vmem:[#allocation5 + $0xd8] sm:$0xff]
    %v182 = vld [vmem:[#allocation5 + $0xe0] sm:$0xff]
    %v183 = vld [vmem:[#allocation5 + $0xe8] sm:$0xff]
    %v184 = vld [vmem:[#allocation5 + $0xf0] sm:$0xff]
    %v185 = vld [vmem:[#allocation5 + $0xf8] sm:$0xff]
    %v186 = vld [vmem:[#allocation5 + $0x100] sm:$0xff]
    %v187 = vld [vmem:[#allocation5 + $0x108] sm:$0xff]
    %v188 = vld [vmem:[#allocation5 + $0x110] sm:$0xff]
    %v189 = vld [vmem:[#allocation5 + $0x118] sm:$0xff]
    %v190 = vld [vmem:[#allocation5 + $0x120] sm:$0xff]
    %v191 = vld [vmem:[#allocation5 + $0x128] sm:$0xff]
    %v192 = vld [vmem:[#allocation5 + $0x130] sm:$0xff]
    %v193 = vld [vmem:[#allocation5 + $0x138] sm:$0xff]
    %v194 = vld [vmem:[#allocation5 + $0x140] sm:$0x3]
    %v195 = vld [vmem:[#allocation5 + $0x148] sm:$0x3]
    %v196 = vpack.c.bf16 %v156, %v154
    %v197 = vpack.c.bf16 %v157, %v155
    %v198 = vpack.c.bf16 %v160, %v158
    %v199 = vpack.c.bf16 %v161, %v159
    %v200 = vpack.c.bf16 %v164, %v162
    %v201 = vpack.c.bf16 %v165, %v163
    %v202 = vpack.c.bf16 %v168, %v166
    %v203 = vpack.c.bf16 %v169, %v167
    %v204 = vpack.c.bf16 %v172, %v170
    %v205 = vpack.c.bf16 %v173, %v171
    %v206 = vpack.c.bf16 %v176, %v174
    %v207 = vpack.c.bf16 %v177, %v175
    %v208 = vpack.c.bf16 %v180, %v178
    %v209 = vpack.c.bf16 %v181, %v179
    %v210 = vpack.c.bf16 %v184, %v182
    %v211 = vpack.c.bf16 %v185, %v183
    %v212 = vpack.c.bf16 %v188, %v186
    %v213 = vpack.c.bf16 %v189, %v187
    %v214 = vpack.c.bf16 %v192, %v190
    %v215 = vpack.c.bf16 %v193, %v191
    %v216 = vpack.c.bf16 %v194, %v194
    %v217 = vpack.c.bf16 %v195, %v195
    %v218 = vld [vmem:[#allocation8] sm:$0xff]
    %v219 = vld [vmem:[#allocation8 + $0x8] sm:$0xff]
    %v220 = vld [vmem:[#allocation8 + $0x10] sm:$0xff]
    %v221 = vld [vmem:[#allocation8 + $0x18] sm:$0xff]
    %v222 = vld [vmem:[#allocation8 + $0x20] sm:$0xff]
    %v223 = vld [vmem:[#allocation8 + $0x28] sm:$0xff]
    %v224 = vld [vmem:[#allocation8 + $0x30] sm:$0xff]
    %v225 = vld [vmem:[#allocation8 + $0x38] sm:$0xff]
    %v226 = vld [vmem:[#allocation8 + $0x40] sm:$0xff]
    %v227 = vld [vmem:[#allocation8 + $0x48] sm:$0xff]
    %v228 = vld [vmem:[#allocation8 + $0x50] sm:$0xff]
    %v229 = vld [vmem:[#allocation8 + $0x58] sm:$0xff]
    %v230 = vld [vmem:[#allocation8 + $0x60] sm:$0xff]
    %v231 = vld [vmem:[#allocation8 + $0x68] sm:$0xff]
    %v232 = vld [vmem:[#allocation8 + $0x70] sm:$0xff]
    %v233 = vld [vmem:[#allocation8 + $0x78] sm:$0xff]
    %v234 = vld [vmem:[#allocation8 + $0x80] sm:$0xff]
    %v235 = vld [vmem:[#allocation8 + $0x88] sm:$0xff]
    %v236 = vld [vmem:[#allocation8 + $0x90] sm:$0xff]
    %v237 = vld [vmem:[#allocation8 + $0x98] sm:$0xff]
    %v238 = vld [vmem:[#allocation8 + $0xa0] sm:$0x3]
    %v239 = vpack.c.bf16 %v219, %v218
    %v240 = vpack.c.bf16 %v221, %v220
    %v241 = vpack.c.bf16 %v223, %v222
    %v242 = vpack.c.bf16 %v225, %v224
    %v243 = vpack.c.bf16 %v227, %v226
    %v244 = vpack.c.bf16 %v229, %v228
    %v245 = vpack.c.bf16 %v231, %v230
    %v246 = vpack.c.bf16 %v233, %v232
    %v247 = vpack.c.bf16 %v235, %v234
    %v248 = vpack.c.bf16 %v237, %v236
    %v249 = vpack.c.bf16 %v238, %v238
    %v250 = vld [vmem:[#allocation10] sm:$0xff]
    %v251 = vld [vmem:[#allocation10 + $0x8] sm:$0xff]
    %v252 = vld [vmem:[#allocation10 + $0x10] sm:$0xff]
    %v253 = vld [vmem:[#allocation10 + $0x18] sm:$0xff]
    %v254 = vld [vmem:[#allocation10 + $0x20] sm:$0xff]
    %v255 = vld [vmem:[#allocation10 + $0x28] sm:$0xff]
    %v256 = vld [vmem:[#allocation10 + $0x30] sm:$0xff]
    %v257 = vld [vmem:[#allocation10 + $0x38] sm:$0xff]
    %v258 = vld [vmem:[#allocation10 + $0x40] sm:$0xff]
    %v259 = vld [vmem:[#allocation10 + $0x48] sm:$0xff]
    %v260 = vld [vmem:[#allocation10 + $0x50] sm:$0xff]
    %v261 = vld [vmem:[#allocation10 + $0x58] sm:$0xff]
    %v262 = vld [vmem:[#allocation10 + $0x60] sm:$0xff]
    %v263 = vld [vmem:[#allocation10 + $0x68] sm:$0xff]
    %v264 = vld [vmem:[#allocation10 + $0x70] sm:$0xff]
    %v265 = vld [vmem:[#allocation10 + $0x78] sm:$0xff]
    %v266 = vld [vmem:[#allocation10 + $0x80] sm:$0xff]
    %v267 = vld [vmem:[#allocation10 + $0x88] sm:$0xff]
    %v268 = vld [vmem:[#allocation10 + $0x90] sm:$0xff]
    %v269 = vld [vmem:[#allocation10 + $0x98] sm:$0xff]
    %v270 = vld [vmem:[#allocation10 + $0xa0] sm:$0x3]
    %v271 = vpack.c.bf16 %v251, %v250
    %v272 = vpack.c.bf16 %v253, %v252
    %v273 = vpack.c.bf16 %v255, %v254
    %v274 = vpack.c.bf16 %v257, %v256
    %v275 = vpack.c.bf16 %v259, %v258
    %v276 = vpack.c.bf16 %v261, %v260
    %v277 = vpack.c.bf16 %v263, %v262
    %v278 = vpack.c.bf16 %v265, %v264
    %v279 = vpack.c.bf16 %v267, %v266
    %v280 = vpack.c.bf16 %v269, %v268
    %v281 = vpack.c.bf16 %v270, %v270
    %vm282 = vcmask 277504
    %v284 = vsel %vm282, %v197, 0
    %v287 = vsel %vm282, %v199, 0
    %v290 = vsel %vm282, %v201, 0
    %v293 = vsel %vm282, %v203, 0
    %v296 = vsel %vm282, %v205, 0
    %v299 = vsel %vm282, %v207, 0
    %v302 = vsel %vm282, %v209, 0
    %v305 = vsel %vm282, %v211, 0
    %v308 = vsel %vm282, %v213, 0
    %v311 = vsel %vm282, %v215, 0
    %v314 = vsel %vm282, %v217, 0
    %vm316 = vcmask 1040384
    %v318 = vsel %vm316, %v281, 0
    %320 = vmatprep.subr.bf16.mxu0 0
    %321 = vmatpush1.bf16.msra.mxu0 %v271
    %322 = vmatprep.subr.bf16.mxu0 0
    %323 = vmatpush1.bf16.msra.mxu0 %v272
    %324 = vmatprep.subr.bf16.mxu0 0
    %325 = vmatpush1.bf16.msra.mxu0 %v273
    %326 = vmatprep.subr.bf16.mxu0 0
    %327 = vmatpush1.bf16.msra.mxu0 %v274
    %328 = vmatprep.subr.bf16.mxu0 0
    %329 = vmatpush1.bf16.msra.mxu0 %v275
    %330 = vmatprep.subr.bf16.mxu0 0
    %331 = vmatpush1.bf16.msra.mxu0 %v276
    %332 = vmatprep.subr.bf16.mxu0 0
    %333 = vmatpush1.bf16.msra.mxu0 %v277
    %334 = vmatprep.subr.bf16.mxu0 0
    %335 = vmatpush1.bf16.msra.mxu0 %v278
    %336 = vmatprep.subr.bf16.mxu0 0
    %337 = vmatpush1.bf16.msra.mxu0 %v279
    %338 = vmatprep.subr.bf16.mxu0 0
    %339 = vmatpush1.bf16.msra.mxu0 %v280
    %340 = vmatprep.subr.bf16.mxu0 0
    %341 = vmatpush1.bf16.msra.mxu0 %v318
    %342 = vmatprep.subr.bf16.mxu0 0
    %343 = vmatpush1.bf16.msra.mxu0 0
    %344 = vmatprep.subr.bf16.mxu0 0
    %345 = vmatpush1.bf16.msra.mxu0 0
    %346 = vmatprep.subr.bf16.mxu0 0
    %347 = vmatpush1.bf16.msra.mxu0 0
    %348 = vmatprep.subr.bf16.mxu0 0
    %349 = vmatpush1.bf16.msra.mxu0 0
    %350 = vmatprep.subr.bf16.mxu0 0
    %351 = vmatpush1.bf16.msra.mxu0 0
    %352 = vmatprep.mubr.bf16.mxu0 %v284
    %353 = vmatmul.mubr.bf16.gmra.mrb[0].mxu0 %v196
    %v354 = vpop.f32.mrb[0].mxu0
    %v355 = vadd.f32 0.0, %v354
    %v356 = vpop.f32.mrb[0].mxu0
    %v357 = vpop.f32.mrb[0].mxu0
    %v358 = vadd.f32 0.0, %v357
    %v359 = vpop.f32.mrb[0].mxu0
    %360 = vmatprep.mubr.bf16.mxu0 %v287
    %361 = vmatmul.mubr.bf16.gmra.mrb[0].mxu0 %v198
    %v362 = vpop.f32.mrb[0].mxu0
    %v363 = vadd.f32 0.0, %v362
    %v364 = vpop.f32.mrb[0].mxu0
    %v365 = vpop.f32.mrb[0].mxu0
    %v366 = vadd.f32 0.0, %v365
    %v367 = vpop.f32.mrb[0].mxu0
    %368 = vmatprep.mubr.bf16.mxu0 %v290
    %369 = vmatmul.mubr.bf16.gmra.mrb[0].mxu0 %v200
    %v370 = vpop.f32.mrb[0].mxu0
    %v371 = vadd.f32 0.0, %v370
    %v372 = vpop.f32.mrb[0].mxu0
    %v373 = vpop.f32.mrb[0].mxu0
    %v374 = vadd.f32 0.0, %v373
    %v375 = vpop.f32.mrb[0].mxu0
    %376 = vmatprep.mubr.bf16.mxu0 %v293
    %377 = vmatmul.mubr.bf16.gmra.mrb[0].mxu0 %v202
    %v378 = vpop.f32.mrb[0].mxu0
    %v379 = vadd.f32 0.0, %v378
    %v380 = vpop.f32.mrb[0].mxu0
    %v381 = vpop.f32.mrb[0].mxu0
    %v382 = vadd.f32 0.0, %v381
    %v383 = vpop.f32.mrb[0].mxu0
    %384 = vmatprep.mubr.bf16.mxu0 %v296
    %385 = vmatmul.mubr.bf16.gmra.mrb[0].mxu0 %v204
    %v386 = vpop.f32.mrb[0].mxu0
    %v387 = vadd.f32 0.0, %v386
    %v388 = vpop.f32.mrb[0].mxu0
    %v389 = vpop.f32.mrb[0].mxu0
    %v390 = vadd.f32 0.0, %v389
    %v391 = vpop.f32.mrb[0].mxu0
    %392 = vmatprep.mubr.bf16.mxu0 %v299
    %393 = vmatmul.mubr.bf16.gmra.mrb[0].mxu0 %v206
    %v394 = vpop.f32.mrb[0].mxu0
    %v395 = vadd.f32 0.0, %v394
    %v396 = vpop.f32.mrb[0].mxu0
    %v397 = vpop.f32.mrb[0].mxu0
    %v398 = vadd.f32 0.0, %v397
    %v399 = vpop.f32.mrb[0].mxu0
    %400 = vmatprep.mubr.bf16.mxu0 %v302
    %401 = vmatmul.mubr.bf16.gmra.mrb[0].mxu0 %v208
    %v402 = vpop.f32.mrb[0].mxu0
    %v403 = vadd.f32 0.0, %v402
    %v404 = vpop.f32.mrb[0].mxu0
    %v405 = vpop.f32.mrb[0].mxu0
    %v406 = vadd.f32 0.0, %v405
    %v407 = vpop.f32.mrb[0].mxu0
    %408 = vmatprep.mubr.bf16.mxu0 %v305
    %409 = vmatmul.mubr.bf16.gmra.mrb[0].mxu0 %v210
    %v410 = vpop.f32.mrb[0].mxu0
    %v411 = vadd.f32 0.0, %v410
    %v412 = vpop.f32.mrb[0].mxu0
    %v413 = vpop.f32.mrb[0].mxu0
    %v414 = vadd.f32 0.0, %v413
    %v415 = vpop.f32.mrb[0].mxu0
    %416 = vmatprep.mubr.bf16.mxu0 %v308
    %417 = vmatmul.mubr.bf16.gmra.mrb[0].mxu0 %v212
    %v418 = vpop.f32.mrb[0].mxu0
    %v419 = vadd.f32 0.0, %v418
    %v420 = vpop.f32.mrb[0].mxu0
    %v421 = vpop.f32.mrb[0].mxu0
    %v422 = vadd.f32 0.0, %v421
    %v423 = vpop.f32.mrb[0].mxu0
    %424 = vmatprep.mubr.bf16.mxu0 %v311
    %425 = vmatmul.mubr.bf16.gmra.mrb[0].mxu0 %v214
    %v426 = vpop.f32.mrb[0].mxu0
    %v427 = vadd.f32 0.0, %v426
    %v428 = vpop.f32.mrb[0].mxu0
    %v429 = vpop.f32.mrb[0].mxu0
    %v430 = vadd.f32 0.0, %v429
    %v431 = vpop.f32.mrb[0].mxu0
    %432 = vmatprep.mubr.bf16.mxu0 %v314
    %433 = vmatmul.mubr.bf16.gmra.mrb[0].mxu0 %v216
    %v434 = vpop.f32.mrb[0].mxu0
    %v435 = vadd.f32 0.0, %v434
    %v436 = vpop.f32.mrb[0].mxu0
    %v437 = vpop.f32.mrb[0].mxu0
    %v438 = vpop.f32.mrb[0].mxu0
    %439 = vdwg.mxu0
    %v441 = vsel %vm282, %v133, 0
    %v444 = vsel %vm282, %v135, 0
    %v447 = vsel %vm282, %v137, 0
    %v450 = vsel %vm282, %v139, 0
    %v453 = vsel %vm282, %v141, 0
    %v456 = vsel %vm282, %v143, 0
    %v459 = vsel %vm282, %v145, 0
    %v462 = vsel %vm282, %v147, 0
    %v465 = vsel %vm282, %v149, 0
    %v468 = vsel %vm282, %v151, 0
    %v471 = vsel %vm282, %v153, 0
    %v474 = vsel %vm316, %v249, 0
    %476 = vmatprep.subr.bf16.mxu0 0
    %477 = vmatpush1.bf16.msra.mxu0 %v239
    %478 = vmatprep.subr.bf16.mxu0 0
    %479 = vmatpush1.bf16.msra.mxu0 %v240
    %480 = vmatprep.subr.bf16.mxu0 0
    %481 = vmatpush1.bf16.msra.mxu0 %v241
    %482 = vmatprep.subr.bf16.mxu0 0
    %483 = vmatpush1.bf16.msra.mxu0 %v242
    %484 = vmatprep.subr.bf16.mxu0 0
    %485 = vmatpush1.bf16.msra.mxu0 %v243
    %486 = vmatprep.subr.bf16.mxu0 0
    %487 = vmatpush1.bf16.msra.mxu0 %v244
    %488 = vmatprep.subr.bf16.mxu0 0
    %489 = vmatpush1.bf16.msra.mxu0 %v245
    %490 = vmatprep.subr.bf16.mxu0 0
    %491 = vmatpush1.bf16.msra.mxu0 %v246
    %492 = vmatprep.subr.bf16.mxu0 0
    %493 = vmatpush1.bf16.msra.mxu0 %v247
    %494 = vmatprep.subr.bf16.mxu0 0
    %495 = vmatpush1.bf16.msra.mxu0 %v248
    %496 = vmatprep.subr.bf16.mxu0 0
    %497 = vmatpush1.bf16.msra.mxu0 %v474
    %498 = vmatprep.subr.bf16.mxu0 0
    %499 = vmatpush1.bf16.msra.mxu0 0
    %500 = vmatprep.subr.bf16.mxu0 0
    %501 = vmatpush1.bf16.msra.mxu0 0
    %502 = vmatprep.subr.bf16.mxu0 0
    %503 = vmatpush1.bf16.msra.mxu0 0
    %504 = vmatprep.subr.bf16.mxu0 0
    %505 = vmatpush1.bf16.msra.mxu0 0
    %506 = vmatprep.subr.bf16.mxu0 0
    %507 = vmatpush1.bf16.msra.mxu0 0
    %508 = vmatprep.mubr.bf16.mxu0 %v441
    %509 = vmatmul.mubr.bf16.gmra.mrb[0].mxu0 %v132
    %v510 = vpop.f32.mrb[0].mxu0
    %v511 = vadd.f32 %v355, %v510
    %v512 = vpop.f32.mrb[0].mxu0
    %v513 = vpop.f32.mrb[0].mxu0
    %v514 = vadd.f32 %v358, %v513
    %v515 = vpop.f32.mrb[0].mxu0
    %516 = vmatprep.mubr.bf16.mxu0 %v444
    %517 = vmatmul.mubr.bf16.gmra.mrb[0].mxu0 %v134
    %v518 = vpop.f32.mrb[0].mxu0
    %v519 = vadd.f32 %v363, %v518
    %v520 = vpop.f32.mrb[0].mxu0
    %v521 = vpop.f32.mrb[0].mxu0
    %v522 = vadd.f32 %v366, %v521
    %v523 = vpop.f32.mrb[0].mxu0
    %524 = vmatprep.mubr.bf16.mxu0 %v447
    %525 = vmatmul.mubr.bf16.gmra.mrb[0].mxu0 %v136
    %v526 = vpop.f32.mrb[0].mxu0
    %v527 = vadd.f32 %v371, %v526
    %v528 = vpop.f32.mrb[0].mxu0
    %v529 = vpop.f32.mrb[0].mxu0
    %v530 = vadd.f32 %v374, %v529
    %v531 = vpop.f32.mrb[0].mxu0
    %532 = vmatprep.mubr.bf16.mxu0 %v450
    %533 = vmatmul.mubr.bf16.gmra.mrb[0].mxu0 %v138
    %v534 = vpop.f32.mrb[0].mxu0
    %v535 = vadd.f32 %v379, %v534
    %v536 = vpop.f32.mrb[0].mxu0
    %v537 = vpop.f32.mrb[0].mxu0
    %v538 = vadd.f32 %v382, %v537
    %v539 = vpop.f32.mrb[0].mxu0
    %540 = vmatprep.mubr.bf16.mxu0 %v453
    %541 = vmatmul.mubr.bf16.gmra.mrb[0].mxu0 %v140
    %v542 = vpop.f32.mrb[0].mxu0
    %v543 = vadd.f32 %v387, %v542
    %v544 = vpop.f32.mrb[0].mxu0
    %v545 = vpop.f32.mrb[0].mxu0
    %v546 = vadd.f32 %v390, %v545
    %v547 = vpop.f32.mrb[0].mxu0
    %548 = vmatprep.mubr.bf16.mxu0 %v456
    %549 = vmatmul.mubr.bf16.gmra.mrb[0].mxu0 %v142
    %v550 = vpop.f32.mrb[0].mxu0
    %v551 = vadd.f32 %v395, %v550
    %v552 = vpop.f32.mrb[0].mxu0
    %v553 = vpop.f32.mrb[0].mxu0
    %v554 = vadd.f32 %v398, %v553
    %v555 = vpop.f32.mrb[0].mxu0
    %556 = vmatprep.mubr.bf16.mxu0 %v459
    %557 = vmatmul.mubr.bf16.gmra.mrb[0].mxu0 %v144
    %v558 = vpop.f32.mrb[0].mxu0
    %v559 = vadd.f32 %v403, %v558
    %v560 = vpop.f32.mrb[0].mxu0
    %v561 = vpop.f32.mrb[0].mxu0
    %v562 = vadd.f32 %v406, %v561
    %v563 = vpop.f32.mrb[0].mxu0
    %564 = vmatprep.mubr.bf16.mxu0 %v462
    %565 = vmatmul.mubr.bf16.gmra.mrb[0].mxu0 %v146
    %v566 = vpop.f32.mrb[0].mxu0
    %v567 = vadd.f32 %v411, %v566
    %v568 = vpop.f32.mrb[0].mxu0
    %v569 = vpop.f32.mrb[0].mxu0
    %v570 = vadd.f32 %v414, %v569
    %v571 = vpop.f32.mrb[0].mxu0
    %572 = vmatprep.mubr.bf16.mxu0 %v465
    %573 = vmatmul.mubr.bf16.gmra.mrb[0].mxu0 %v148
    %v574 = vpop.f32.mrb[0].mxu0
    %v575 = vadd.f32 %v419, %v574
    %v576 = vpop.f32.mrb[0].mxu0
    %v577 = vpop.f32.mrb[0].mxu0
    %v578 = vadd.f32 %v422, %v577
    %v579 = vpop.f32.mrb[0].mxu0
    %580 = vmatprep.mubr.bf16.mxu0 %v468
    %581 = vmatmul.mubr.bf16.gmra.mrb[0].mxu0 %v150
    %v582 = vpop.f32.mrb[0].mxu0
    %v583 = vadd.f32 %v427, %v582
    %v584 = vpop.f32.mrb[0].mxu0
    %v585 = vpop.f32.mrb[0].mxu0
    %v586 = vadd.f32 %v430, %v585
    %v587 = vpop.f32.mrb[0].mxu0
    %588 = vmatprep.mubr.bf16.mxu0 %v471
    %589 = vmatmul.mubr.bf16.gmra.mrb[0].mxu0 %v152
    %v590 = vpop.f32.mrb[0].mxu0
    %v591 = vadd.f32 %v435, %v590
    %v592 = vpop.f32.mrb[0].mxu0
    %v593 = vpop.f32.mrb[0].mxu0
    %v594 = vpop.f32.mrb[0].mxu0
    %595 = vdwg.mxu0
    %v596 = vld [vmem:[#allocation7] sm:$0xff]
    %v597 = vld [vmem:[#allocation7 + $0x8] sm:$0xff]
    %v598 = vld [vmem:[#allocation7 + $0x10] sm:$0xff]
    %v599 = vld [vmem:[#allocation7 + $0x18] sm:$0xff]
    %v600 = vld [vmem:[#allocation7 + $0x20] sm:$0xff]
    %v601 = vld [vmem:[#allocation7 + $0x28] sm:$0xff]
    %v602 = vld [vmem:[#allocation7 + $0x30] sm:$0xff]
    %v603 = vld [vmem:[#allocation7 + $0x38] sm:$0xff]
    %v604 = vld [vmem:[#allocation7 + $0x40] sm:$0xff]
    %v605 = vld [vmem:[#allocation7 + $0x48] sm:$0xff]
    %v606 = vld [vmem:[#allocation7 + $0x50] sm:$0xff]
    %v607 = vld [vmem:[#allocation7 + $0x58] sm:$0xff]
    %v608 = vld [vmem:[#allocation7 + $0x60] sm:$0xff]
    %v609 = vld [vmem:[#allocation7 + $0x68] sm:$0xff]
    %v610 = vld [vmem:[#allocation7 + $0x70] sm:$0xff]
    %v611 = vld [vmem:[#allocation7 + $0x78] sm:$0xff]
    %v612 = vld [vmem:[#allocation7 + $0x80] sm:$0xff]
    %v613 = vld [vmem:[#allocation7 + $0x88] sm:$0xff]
    %v614 = vld [vmem:[#allocation7 + $0x90] sm:$0xff]
    %v615 = vld [vmem:[#allocation7 + $0x98] sm:$0xff]
    %v616 = vld [vmem:[#allocation7 + $0xa0] sm:$0x3]
    %v617 = vadd.f32 %v511, %v596
    %v618 = vadd.f32 %v514, %v597
    %v619 = vadd.f32 %v519, %v598
    %v620 = vadd.f32 %v522, %v599
    %v621 = vadd.f32 %v527, %v600
    %v622 = vadd.f32 %v530, %v601
    %v623 = vadd.f32 %v535, %v602
    %v624 = vadd.f32 %v538, %v603
    %v625 = vadd.f32 %v543, %v604
    %v626 = vadd.f32 %v546, %v605
    %v627 = vadd.f32 %v551, %v606
    %v628 = vadd.f32 %v554, %v607
    %v629 = vadd.f32 %v559, %v608
    %v630 = vadd.f32 %v562, %v609
    %v631 = vadd.f32 %v567, %v610
    %v632 = vadd.f32 %v570, %v611
    %v633 = vadd.f32 %v575, %v612
    %v634 = vadd.f32 %v578, %v613
    %v635 = vadd.f32 %v583, %v614
    %v636 = vadd.f32 %v586, %v615
    %v637 = vadd.f32 %v591, %v616
    %v638 = vxor.u32 %v617, 2147483648
    %v639 = vxor.u32 %v618, 2147483648
    %v640 = vxor.u32 %v619, 2147483648
    %v641 = vxor.u32 %v620, 2147483648
    %v642 = vxor.u32 %v621, 2147483648
    %v643 = vxor.u32 %v622, 2147483648
    %v644 = vxor.u32 %v623, 2147483648
    %v645 = vxor.u32 %v624, 2147483648
    %v646 = vxor.u32 %v625, 2147483648
    %v647 = vxor.u32 %v626, 2147483648
    %v648 = vxor.u32 %v627, 2147483648
    %v649 = vxor.u32 %v628, 2147483648
    %v650 = vxor.u32 %v629, 2147483648
    %v651 = vxor.u32 %v630, 2147483648
    %v652 = vxor.u32 %v631, 2147483648
    %v653 = vxor.u32 %v632, 2147483648
    %v654 = vxor.u32 %v633, 2147483648
    %v655 = vxor.u32 %v634, 2147483648
    %v656 = vxor.u32 %v635, 2147483648
    %v657 = vxor.u32 %v636, 2147483648
    %v658 = vxor.u32 %v637, 2147483648
    %v659 = vmul.f32 %v638, 1.442695
    %v660 = vpow.pop %v659
    %v661 = vmul.f32 %v639, 1.442695
    %v662 = vpow.pop %v661
    %v663 = vmul.f32 %v640, 1.442695
    %v664 = vpow.pop %v663
    %v665 = vmul.f32 %v641, 1.442695
    %v666 = vpow.pop %v665
    %v667 = vmul.f32 %v642, 1.442695
    %v668 = vpow.pop %v667
    %v669 = vmul.f32 %v643, 1.442695
    %v670 = vpow.pop %v669
    %v671 = vmul.f32 %v644, 1.442695
    %v672 = vpow.pop %v671
    %v673 = vmul.f32 %v645, 1.442695
    %v674 = vpow.pop %v673
    %v675 = vmul.f32 %v646, 1.442695
    %v676 = vpow.pop %v675
    %v677 = vmul.f32 %v647, 1.442695
    %v678 = vpow.pop %v677
    %v679 = vmul.f32 %v648, 1.442695
    %v680 = vpow.pop %v679
    %v681 = vmul.f32 %v649, 1.442695
    %v682 = vpow.pop %v681
    %v683 = vmul.f32 %v650, 1.442695
    %v684 = vpow.pop %v683
    %v685 = vmul.f32 %v651, 1.442695
    %v686 = vpow.pop %v685
    %v687 = vmul.f32 %v652, 1.442695
    %v688 = vpow.pop %v687
    %v689 = vmul.f32 %v653, 1.442695
    %v690 = vpow.pop %v689
    %v691 = vmul.f32 %v654, 1.442695
    %v692 = vpow.pop %v691
    %v693 = vmul.f32 %v655, 1.442695
    %v694 = vpow.pop %v693
    %v695 = vmul.f32 %v656, 1.442695
    %v696 = vpow.pop %v695
    %v697 = vmul.f32 %v657, 1.442695
    %v698 = vpow.pop %v697
    %v699 = vmul.f32 %v658, 1.442695
    %v700 = vpow.pop %v699
    %v701 = vadd.f32 %v660, 1.0
    %v702 = vadd.f32 %v662, 1.0
    %v703 = vadd.f32 %v664, 1.0
    %v704 = vadd.f32 %v666, 1.0
    %v705 = vadd.f32 %v668, 1.0
    %v706 = vadd.f32 %v670, 1.0
    %v707 = vadd.f32 %v672, 1.0
    %v708 = vadd.f32 %v674, 1.0
    %v709 = vadd.f32 %v676, 1.0
    %v710 = vadd.f32 %v678, 1.0
    %v711 = vadd.f32 %v680, 1.0
    %v712 = vadd.f32 %v682, 1.0
    %v713 = vadd.f32 %v684, 1.0
    %v714 = vadd.f32 %v686, 1.0
    %v715 = vadd.f32 %v688, 1.0
    %v716 = vadd.f32 %v690, 1.0
    %v717 = vadd.f32 %v692, 1.0
    %v718 = vadd.f32 %v694, 1.0
    %v719 = vadd.f32 %v696, 1.0
    %v720 = vadd.f32 %v698, 1.0
    %v721 = vadd.f32 %v700, 1.0
    %v722 = vrcp.pop %v701
    %v723 = vmul.f32 1.0, %v722
    %v724 = vrcp.pop %v702
    %v725 = vmul.f32 1.0, %v724
    %v726 = vrcp.pop %v703
    %v727 = vmul.f32 1.0, %v726
    %v728 = vrcp.pop %v704
    %v729 = vmul.f32 1.0, %v728
    %v730 = vrcp.pop %v705
    %v731 = vmul.f32 1.0, %v730
    %v732 = vrcp.pop %v706
    %v733 = vmul.f32 1.0, %v732
    %v734 = vrcp.pop %v707
    %v735 = vmul.f32 1.0, %v734
    %v736 = vrcp.pop %v708
    %v737 = vmul.f32 1.0, %v736
    %v738 = vrcp.pop %v709
    %v739 = vmul.f32 1.0, %v738
    %v740 = vrcp.pop %v710
    %v741 = vmul.f32 1.0, %v740
    %v742 = vrcp.pop %v711
    %v743 = vmul.f32 1.0, %v742
    %v744 = vrcp.pop %v712
    %v745 = vmul.f32 1.0, %v744
    %v746 = vrcp.pop %v713
    %v747 = vmul.f32 1.0, %v746
    %v748 = vrcp.pop %v714
    %v749 = vmul.f32 1.0, %v748
    %v750 = vrcp.pop %v715
    %v751 = vmul.f32 1.0, %v750
    %v752 = vrcp.pop %v716
    %v753 = vmul.f32 1.0, %v752
    %v754 = vrcp.pop %v717
    %v755 = vmul.f32 1.0, %v754
    %v756 = vrcp.pop %v718
    %v757 = vmul.f32 1.0, %v756
    %v758 = vrcp.pop %v719
    %v759 = vmul.f32 1.0, %v758
    %v760 = vrcp.pop %v720
    %v761 = vmul.f32 1.0, %v760
    %v762 = vrcp.pop %v721
    %v763 = vmul.f32 1.0, %v762
    %vm764 = vcmask 818176
    %765 = vst.msk [vmem:[#allocation11] sm:$0xff] %vm764, %v723
    %766 = vst.msk [vmem:[#allocation11 + $0x8] sm:$0xff] %vm764, %v725
    %767 = vst.msk [vmem:[#allocation11 + $0x10] sm:$0xff] %vm764, %v727
    %768 = vst.msk [vmem:[#allocation11 + $0x18] sm:$0xff] %vm764, %v729
    %769 = vst.msk [vmem:[#allocation11 + $0x20] sm:$0xff] %vm764, %v731
    %770 = vst.msk [vmem:[#allocation11 + $0x28] sm:$0xff] %vm764, %v733
    %771 = vst.msk [vmem:[#allocation11 + $0x30] sm:$0xff] %vm764, %v735
    %772 = vst.msk [vmem:[#allocation11 + $0x38] sm:$0xff] %vm764, %v737
    %773 = vst.msk [vmem:[#allocation11 + $0x40] sm:$0xff] %vm764, %v739
    %774 = vst.msk [vmem:[#allocation11 + $0x48] sm:$0xff] %vm764, %v741
    %775 = vst.msk [vmem:[#allocation11 + $0x50] sm:$0xff] %vm764, %v743
    %776 = vst.msk [vmem:[#allocation11 + $0x58] sm:$0xff] %vm764, %v745
    %777 = vst.msk [vmem:[#allocation11 + $0x60] sm:$0xff] %vm764, %v747
    %778 = vst.msk [vmem:[#allocation11 + $0x68] sm:$0xff] %vm764, %v749
    %779 = vst.msk [vmem:[#allocation11 + $0x70] sm:$0xff] %vm764, %v751
    %780 = vst.msk [vmem:[#allocation11 + $0x78] sm:$0xff] %vm764, %v753
    %781 = vst.msk [vmem:[#allocation11 + $0x80] sm:$0xff] %vm764, %v755
    %782 = vst.msk [vmem:[#allocation11 + $0x88] sm:$0xff] %vm764, %v757
    %783 = vst.msk [vmem:[#allocation11 + $0x90] sm:$0xff] %vm764, %v759
    %784 = vst.msk [vmem:[#allocation11 + $0x98] sm:$0xff] %vm764, %v761
    %vm785 = vcmask 812032
    %786 = vst.msk [vmem:[#allocation11 + $0xa0] sm:$0x3] %vm785, %v763
    // Predicated region
    $region42: #{mat_gru_gate_1.1} parent=1 // pred_check
      _
    $region43: #{mat_gru_gate_1.1} parent=1 // pred_check_branch
      %788 = sbr.rel (0) target = $region45
    $region44: #{mat_gru_gate_1.1} parent=1 // pred_region
      %s790 = ssub.s32 2688, 2688
      %791 = vsyncadd [#allocation4], %s790
      %s792 = sshll.u32 [#allocation11], 4
      %s793 = int_to_ptr.vmem [resolvable:$true] %s792
      %798 = dma.vmem_to_hbm [thread:$0]  %s793, 2688, %s5, [#allocation4], 128, 128, 8
    $region45: #{mat_gru_gate_1.1} parent=1 // pred_fallthru
      _
    // Predicated region
    $region46: #{mat_gru_gate_1.1} parent=1 // pred_check
      _
    $region47: #{mat_gru_gate_1.1} parent=1 // pred_check_branch
      %800 = sbr.rel (0) target = $region49
    $region48: #{mat_gru_gate_1.1} parent=1 // pred_region
      %801 = dma.done [#allocation4], 2688
    $region49: #{mat_gru_gate_1.1} parent=1 // pred_fallthru
      _
    %802 = vsyncpa [#allocation3], 1
    %803 = vsyncpa [#allocation6], 1
    %804 = vsyncpa [#allocation9], 1
    %805 = vsyncpa [#allocation4], 1

</llo_original>
